<compile_context>
chip_gen: v5e
topology: v5e:2x2
jax: 0.10.0
libtpu: 0.0.40
codegen_flags: <defaults>
</compile_context>

<pallas_src>
import functools

import jax
import jax.numpy as jnp
from jax.experimental import pallas as pl
from jax.experimental.pallas import tpu as pltpu


# ----------------------------------------------------------------------------
# helpers
# ----------------------------------------------------------------------------
def _round_up(v, m):
    return -(-v // m) * m


def _tpu_vmem_bytes():
    """Trace-time VMEM capacity (falls back to the v5e/v6e 128 MiB)."""
    try:
        info = pltpu.get_tpu_info()
        v = int(getattr(info, "vmem_capacity_bytes", 0) or 0)
        if v > 0:
            return v
    except Exception:
        pass
    return 128 * 1024 * 1024


def _select_tiles(N, Cin, C, H, W, r):
    """Pick (rows-per-register-chunk, rows-per-block) with padded-VMEM math."""
    rwr = r * W * r
    lanes_out = _round_up(rwr, 128)      # output block lane padding
    lanes_in = _round_up(W, 128)         # input block lane padding
    fb = 4                               # float32 bytes

    # Rows per unrolled register chunk: acc + Cin expanded copies must stay
    # comfortably inside the 256 KiB vreg file.
    tr = (96 * 1024) // ((Cin + 2) * lanes_out * fb)
    tr = max(8, (min(tr, 256) // 8) * 8)
    tr = min(tr, _round_up(H, 8))

    vmem_cap = _tpu_vmem_bytes()
    multi_core = vmem_cap <= 64 * 1024 * 1024      # v7x: 64 MiB VMEM, 2 TCs
    budget = (20 if multi_core else 48) * 1024 * 1024

    def footprint(th):
        th_p = _round_up(th, 8)
        blk_in = Cin * th_p * lanes_in * fb
        blk_out = C * th_p * lanes_out * fb
        consts = (_round_up(W, 8) + Cin * _round_up(C, 8)
                  + _round_up(C, 8)) * lanes_out * fb
        # inputs/outputs double-buffered by the BlockSpec pipeline
        return 2 * (blk_in + blk_out) + 2 * consts

    th = min(_round_up(H, tr), 8 * tr)   # cap unrolled chunk count per block
    while th > tr and footprint(th) > budget:
        th -= tr
    if multi_core:
        # keep >=4 grid steps so both TensorCores get work under "parallel"
        while th > tr and N * (_round_up(H, th) // th) < 4:
            th -= tr
    return tr, th, vmem_cap, footprint(th)


# ----------------------------------------------------------------------------
# Pallas kernel: fused 1x1 conv (+bias) + PixelShuffle(r), direct NCHW output
# ----------------------------------------------------------------------------
def _upsample_kernel(x_ref, e_ref, w_ref, b_ref, o_ref, *, tr):
    # x_ref: (1, Cin, TH, W)          NCHW input rows
    # e_ref: (W, r*W*r)               constant 0/1 expansion matrix
    # w_ref: (Cin, C, r*W*r)          per-lane permuted 1x1-conv weights
    # b_ref: (C, r*W*r)               per-lane permuted bias
    # o_ref: (1, C, TH, r*W*r)        o[0,c,h, i*(W*r)+w*r+j] == out[c, h*r+i, w*r+j]
    _, cin, th, _ = x_ref.shape
    cch = o_ref.shape[1]

    e = e_ref[...]                                   # hoisted, reused per chunk
    for row0 in range(0, th, tr):                    # static row chunks
        # Place the W input pixels of each channel onto the interleaved output
        # lane grid with one small matmul against the 0/1 expansion matrix
        # (avoids any cross-lane relayout / strided store in the kernel).
        xe = [
            jnp.dot(x_ref[0, ci, pl.ds(row0, tr), :], e,
                    preferred_element_type=jnp.float32)
            for ci in range(cin)
        ]                                            # Cin x (tr, r*W*r)
        for c in range(cch):
            acc = xe[0] * w_ref[0, c] + b_ref[c]     # bias = accumulator init
            for ci in range(1, cin):
                acc = acc + xe[ci] * w_ref[ci, c]    # VPU broadcast MACs
            # dense, lane-wide store: trailing dim r*W*r
            o_ref[0, c, pl.ds(row0, tr), :] = acc.astype(o_ref.dtype)


def upsample_forward(x_nchw, proj_w, proj_b, *, factor=2):
    """UpSample.forward: PixelShuffle(factor)(Conv2d_1x1(x)).

    x_nchw : (N, Cin, H, W) float32        (PyTorch layout)
    proj_w : (Cin*factor*factor, Cin)      (PyTorch Conv2d weight, 1x1 squeezed)
    proj_b : (Cin*factor*factor,)
    returns (N, Cin, H*factor, W*factor)   float32, NCHW
    """
    r = factor
    N, Cin, H, W = x_nchw.shape
    Cout = proj_w.shape[0]
    C = Cout // (r * r)                    # == Cin for this module
    RWr = r * W * r                        # interleaved lane grid: i*(W*r)+w*r+j

    x = x_nchw.astype(jnp.float32)

    # ---- host-side (tiny) parameter prep: fold PixelShuffle into the lanes ----
    # torch out-channel oc = c*r*r + i*r + j  ->  per-lane weight w[cin, c, l']
    # with l' = i*(W*r) + w*r + j (value independent of w).
    w4 = proj_w.astype(jnp.float32).reshape(C, r, r, Cin)           # (c, i, j, cin)
    w_lane = jnp.broadcast_to(
        jnp.transpose(w4, (3, 0, 1, 2))[:, :, :, None, :],          # (cin,c,i,1,j)
        (Cin, C, r, W, r)).reshape(Cin, C, RWr)
    b3 = proj_b.astype(jnp.float32).reshape(C, r, r)                # (c, i, j)
    b_lane = jnp.broadcast_to(b3[:, :, None, :], (C, r, W, r)).reshape(C, RWr)
    # 0/1 expansion: E[w, i*(W*r) + w2*r + j] = (w == w2)
    e_mat = jnp.broadcast_to(
        jnp.eye(W, dtype=jnp.float32)[:, None, :, None], (W, r, W, r)
    ).reshape(W, RWr)

    # ---- tiling (padded-VMEM + generation aware) ----
    tr, th, vmem_cap, est_bytes = _select_tiles(N, Cin, C, H, W, r)
    h_pad = _round_up(H, th)
    if h_pad != H:
        x = jnp.pad(x, ((0, 0), (0, 0), (0, h_pad - H), (0, 0)))

    vmem_limit = int(min(vmem_cap * 3 // 4, max(32 * 1024 * 1024, 2 * est_bytes)))

    conv_flops = 2 * N * H * W * Cin * C * r * r
    expand_flops = 2 * N * H * Cin * W * RWr
    bytes_accessed = 4 * (N * Cin * H * W + N * C * H * RWr
                          + W * RWr + Cin * C * RWr + C * RWr)

    out4 = pl.pallas_call(
        functools.partial(_upsample_kernel, tr=tr),
        out_shape=jax.ShapeDtypeStruct((N, C, h_pad, RWr), jnp.float32),
        grid=(N, h_pad // th),
        in_specs=[
            pl.BlockSpec((1, Cin, th, W), lambda n, t: (n, 0, t, 0)),
            pl.BlockSpec((W, RWr), lambda n, t: (0, 0)),
            pl.BlockSpec((Cin, C, RWr), lambda n, t: (0, 0, 0)),
            pl.BlockSpec((C, RWr), lambda n, t: (0, 0)),
        ],
        out_specs=pl.BlockSpec((1, C, th, RWr), lambda n, t: (n, 0, t, 0)),
        compiler_params=pltpu.CompilerParams(
            dimension_semantics=("parallel", "parallel"),
            vmem_limit_bytes=vmem_limit),
        cost_estimate=pl.CostEstimate(
            flops=conv_flops + expand_flops, transcendentals=0,
            bytes_accessed=bytes_accessed),
    )(x, e_mat, w_lane, b_lane)

    if h_pad != H:
        out4 = out4[:, :, :H, :]
    # Free row-major reshape: (N, C, H, r*W*r) == (N, C, H, r, W, r) -> NCHW out.
    return out4.reshape(N, C, H * r, W * r)


# ----------------------------------------------------------------------------
# Pure-JAX reference (1x1 conv + torch-style PixelShuffle) for correctness
# ----------------------------------------------------------------------------
def _ref_forward(x_nchw, proj_w, proj_b, r):
    N, Cin, H, W = x_nchw.shape
    Cout = proj_w.shape[0]
    C = Cout // (r * r)
    y = jnp.einsum("nchw,oc->nohw", x_nchw, proj_w) + proj_b[None, :, None, None]
    y = y.reshape(N, C, r, r, H, W)
    y = jnp.transpose(y, (0, 1, 4, 2, 5, 3))       # (N, C, H, r, W, r)
    return y.reshape(N, C, H * r, W * r)


# ----------------------------------------------------------------------------
if __name__ == "__main__":
    key = jax.random.PRNGKey(0)
    kx, kw, kb = jax.random.split(key, 3)

    N, Cin, H, W = 2, 4, 16, 16
    factor = 2
    Cout = Cin * factor * factor

    x = jax.random.normal(kx, (N, Cin, H, W), jnp.float32)
    # xavier_normal_(gain=1.0) on a (Cout, Cin, 1, 1) kernel.
    std = (2.0 / (Cin + Cout)) ** 0.5
    proj_w = std * jax.random.normal(kw, (Cout, Cin), jnp.float32)
    # nn.Conv2d default bias init: U(-1/sqrt(fan_in), 1/sqrt(fan_in)).
    bound = 1.0 / (Cin ** 0.5)
    proj_b = jax.random.uniform(kb, (Cout,), jnp.float32, -bound, bound)

    fwd = jax.jit(functools.partial(upsample_forward, factor=factor))
    out = jax.block_until_ready(fwd(x, proj_w, proj_b))
    assert out.shape == (N, Cin, H * factor, W * factor), out.shape

    ref = _ref_forward(x, proj_w, proj_b, factor)
    err = float(jnp.max(jnp.abs(out - ref)))
    assert err < 1e-4, f"max abs error {err}"

    print("KERNEL_OK")
</pallas_src>

<mosaic_0001>
module attributes {stable_mosaic.version = 11 : i64} {
  func.func @_upsample_kernel(%arg0: i32, %arg1: i32, %arg2: memref<1x4x16x16xf32, #tpu.memory_space<vmem>>, %arg3: memref<16x64xf32, #tpu.memory_space<vmem>>, %arg4: memref<4x4x64xf32, #tpu.memory_space<vmem>>, %arg5: memref<4x64xf32, #tpu.memory_space<vmem>>, %arg6: memref<1x4x16x64xf32, #tpu.memory_space<vmem>>) attributes {dimension_semantics = [#tpu.dimension_semantics<parallel>, #tpu.dimension_semantics<parallel>], iteration_bounds = array<i64: 2, 1>, scalar_prefetch = 0 : i64, scratch_operands = 0 : i64, tpu.core_type = #tpu.core_type<tc>, window_params = [{transform_indices = @transform_0, window_bounds = array<i64: 1, 4, 16, 16>}, {pipeline_mode = #tpu.pipeline_mode<synchronous>, transform_indices = @transform_1, window_bounds = array<i64: 16, 64>}, {pipeline_mode = #tpu.pipeline_mode<synchronous>, transform_indices = @transform_2, window_bounds = array<i64: 4, 4, 64>}, {pipeline_mode = #tpu.pipeline_mode<synchronous>, transform_indices = @transform_3, window_bounds = array<i64: 4, 64>}, {transform_indices = @transform_4, window_bounds = array<i64: 1, 4, 16, 64>}]} {
    %c0 = arith.constant 0 : index
    %c0_0 = arith.constant 0 : index
    %0 = vector.load %arg3[%c0, %c0_0] : memref<16x64xf32, #tpu.memory_space<vmem>>, vector<16x64xf32>
    %c0_1 = arith.constant 0 : index
    %c0_2 = arith.constant 0 : index
    %c0_3 = arith.constant 0 : index
    %c0_4 = arith.constant 0 : index
    %1 = vector.load %arg2[%c0_1, %c0_2, %c0_3, %c0_4] : memref<1x4x16x16xf32, #tpu.memory_space<vmem>>, vector<1x1x16x16xf32>
    %2 = vector.shape_cast %1 : vector<1x1x16x16xf32> to vector<16x16xf32>
    %cst = arith.constant dense<0.000000e+00> : vector<16x64xf32>
    %3 = tpu.matmul %2, %0, %cst {dimension_numbers = #tpu.dot_dimension_numbers<[1], [0], [0], [1], [0, 0, 1, 1], [], []>} : vector<16x16xf32>, vector<16x64xf32>, vector<16x64xf32> -> vector<16x64xf32>
    %c0_5 = arith.constant 0 : index
    %c1 = arith.constant 1 : index
    %c0_6 = arith.constant 0 : index
    %c0_7 = arith.constant 0 : index
    %4 = vector.load %arg2[%c0_5, %c1, %c0_6, %c0_7] : memref<1x4x16x16xf32, #tpu.memory_space<vmem>>, vector<1x1x16x16xf32>
    %5 = vector.shape_cast %4 : vector<1x1x16x16xf32> to vector<16x16xf32>
    %cst_8 = arith.constant dense<0.000000e+00> : vector<16x64xf32>
    %6 = tpu.matmul %5, %0, %cst_8 {dimension_numbers = #tpu.dot_dimension_numbers<[1], [0], [0], [1], [0, 0, 1, 1], [], []>} : vector<16x16xf32>, vector<16x64xf32>, vector<16x64xf32> -> vector<16x64xf32>
    %c0_9 = arith.constant 0 : index
    %c2 = arith.constant 2 : index
    %c0_10 = arith.constant 0 : index
    %c0_11 = arith.constant 0 : index
    %7 = vector.load %arg2[%c0_9, %c2, %c0_10, %c0_11] : memref<1x4x16x16xf32, #tpu.memory_space<vmem>>, vector<1x1x16x16xf32>
    %8 = vector.shape_cast %7 : vector<1x1x16x16xf32> to vector<16x16xf32>
    %cst_12 = arith.constant dense<0.000000e+00> : vector<16x64xf32>
    %9 = tpu.matmul %8, %0, %cst_12 {dimension_numbers = #tpu.dot_dimension_numbers<[1], [0], [0], [1], [0, 0, 1, 1], [], []>} : vector<16x16xf32>, vector<16x64xf32>, vector<16x64xf32> -> vector<16x64xf32>
    %c0_13 = arith.constant 0 : index
    %c3 = arith.constant 3 : index
    %c0_14 = arith.constant 0 : index
    %c0_15 = arith.constant 0 : index
    %10 = vector.load %arg2[%c0_13, %c3, %c0_14, %c0_15] : memref<1x4x16x16xf32, #tpu.memory_space<vmem>>, vector<1x1x16x16xf32>
    %11 = vector.shape_cast %10 : vector<1x1x16x16xf32> to vector<16x16xf32>
    %cst_16 = arith.constant dense<0.000000e+00> : vector<16x64xf32>
    %12 = tpu.matmul %11, %0, %cst_16 {dimension_numbers = #tpu.dot_dimension_numbers<[1], [0], [0], [1], [0, 0, 1, 1], [], []>} : vector<16x16xf32>, vector<16x64xf32>, vector<16x64xf32> -> vector<16x64xf32>
    %c0_17 = arith.constant 0 : index
    %c0_18 = arith.constant 0 : index
    %c0_19 = arith.constant 0 : index
    %13 = vector.load %arg4[%c0_17, %c0_18, %c0_19] : memref<4x4x64xf32, #tpu.memory_space<vmem>>, vector<1x1x64xf32>
    %14 = vector.shape_cast %13 : vector<1x1x64xf32> to vector<64xf32>
    %15 = vector.shape_cast %14 : vector<64xf32> to vector<1x64xf32>
    %16 = vector.broadcast %15 : vector<1x64xf32> to vector<16x64xf32>
    %17 = arith.mulf %3, %16 : vector<16x64xf32>
    %c0_20 = arith.constant 0 : index
    %c0_21 = arith.constant 0 : index
    %18 = vector.load %arg5[%c0_20, %c0_21] : memref<4x64xf32, #tpu.memory_space<vmem>>, vector<1x64xf32>
    %19 = vector.shape_cast %18 : vector<1x64xf32> to vector<64xf32>
    %20 = vector.shape_cast %19 : vector<64xf32> to vector<1x64xf32>
    %21 = vector.broadcast %20 : vector<1x64xf32> to vector<16x64xf32>
    %22 = arith.addf %17, %21 : vector<16x64xf32>
    %c1_22 = arith.constant 1 : index
    %c0_23 = arith.constant 0 : index
    %c0_24 = arith.constant 0 : index
    %23 = vector.load %arg4[%c1_22, %c0_23, %c0_24] : memref<4x4x64xf32, #tpu.memory_space<vmem>>, vector<1x1x64xf32>
    %24 = vector.shape_cast %23 : vector<1x1x64xf32> to vector<64xf32>
    %25 = vector.shape_cast %24 : vector<64xf32> to vector<1x64xf32>
    %26 = vector.broadcast %25 : vector<1x64xf32> to vector<16x64xf32>
    %27 = arith.mulf %6, %26 : vector<16x64xf32>
    %28 = arith.addf %22, %27 : vector<16x64xf32>
    %c2_25 = arith.constant 2 : index
    %c0_26 = arith.constant 0 : index
    %c0_27 = arith.constant 0 : index
    %29 = vector.load %arg4[%c2_25, %c0_26, %c0_27] : memref<4x4x64xf32, #tpu.memory_space<vmem>>, vector<1x1x64xf32>
    %30 = vector.shape_cast %29 : vector<1x1x64xf32> to vector<64xf32>
    %31 = vector.shape_cast %30 : vector<64xf32> to vector<1x64xf32>
    %32 = vector.broadcast %31 : vector<1x64xf32> to vector<16x64xf32>
    %33 = arith.mulf %9, %32 : vector<16x64xf32>
    %34 = arith.addf %28, %33 : vector<16x64xf32>
    %c3_28 = arith.constant 3 : index
    %c0_29 = arith.constant 0 : index
    %c0_30 = arith.constant 0 : index
    %35 = vector.load %arg4[%c3_28, %c0_29, %c0_30] : memref<4x4x64xf32, #tpu.memory_space<vmem>>, vector<1x1x64xf32>
    %36 = vector.shape_cast %35 : vector<1x1x64xf32> to vector<64xf32>
    %37 = vector.shape_cast %36 : vector<64xf32> to vector<1x64xf32>
    %38 = vector.broadcast %37 : vector<1x64xf32> to vector<16x64xf32>
    %39 = arith.mulf %12, %38 : vector<16x64xf32>
    %40 = arith.addf %34, %39 : vector<16x64xf32>
    %c0_31 = arith.constant 0 : index
    %c0_32 = arith.constant 0 : index
    %c0_33 = arith.constant 0 : index
    %c0_34 = arith.constant 0 : index
    %41 = vector.load %arg6[%c0_31, %c0_32, %c0_33, %c0_34] : memref<1x4x16x64xf32, #tpu.memory_space<vmem>>, vector<1x1x16x64xf32>
    %42 = vector.shape_cast %41 : vector<1x1x16x64xf32> to vector<16x64xf32>
    %43 = vector.shape_cast %40 : vector<16x64xf32> to vector<1x1x16x64xf32>
    tpu.vector_store %arg6[%c0_31, %c0_32, %c0_33, %c0_34], %43 {strides = array<i32>} : memref<1x4x16x64xf32, #tpu.memory_space<vmem>>, vector<1x1x16x64xf32>,
    %c0_35 = arith.constant 0 : index
    %c1_36 = arith.constant 1 : index
    %c0_37 = arith.constant 0 : index
    %44 = vector.load %arg4[%c0_35, %c1_36, %c0_37] : memref<4x4x64xf32, #tpu.memory_space<vmem>>, vector<1x1x64xf32>
    %45 = vector.shape_cast %44 : vector<1x1x64xf32> to vector<64xf32>
    %46 = vector.shape_cast %45 : vector<64xf32> to vector<1x64xf32>
    %47 = vector.broadcast %46 : vector<1x64xf32> to vector<16x64xf32>
    %48 = arith.mulf %3, %47 : vector<16x64xf32>
    %c1_38 = arith.constant 1 : index
    %c0_39 = arith.constant 0 : index
    %49 = vector.load %arg5[%c1_38, %c0_39] : memref<4x64xf32, #tpu.memory_space<vmem>>, vector<1x64xf32>
    %50 = vector.shape_cast %49 : vector<1x64xf32> to vector<64xf32>
    %51 = vector.shape_cast %50 : vector<64xf32> to vector<1x64xf32>
    %52 = vector.broadcast %51 : vector<1x64xf32> to vector<16x64xf32>
    %53 = arith.addf %48, %52 : vector<16x64xf32>
    %c1_40 = arith.constant 1 : index
    %c1_41 = arith.constant 1 : index
    %c0_42 = arith.constant 0 : index
    %54 = vector.load %arg4[%c1_40, %c1_41, %c0_42] : memref<4x4x64xf32, #tpu.memory_space<vmem>>, vector<1x1x64xf32>
    %55 = vector.shape_cast %54 : vector<1x1x64xf32> to vector<64xf32>
    %56 = vector.shape_cast %55 : vector<64xf32> to vector<1x64xf32>
    %57 = vector.broadcast %56 : vector<1x64xf32> to vector<16x64xf32>
    %58 = arith.mulf %6, %57 : vector<16x64xf32>
    %59 = arith.addf %53, %58 : vector<16x64xf32>
    %c2_43 = arith.constant 2 : index
    %c1_44 = arith.constant 1 : index
    %c0_45 = arith.constant 0 : index
    %60 = vector.load %arg4[%c2_43, %c1_44, %c0_45] : memref<4x4x64xf32, #tpu.memory_space<vmem>>, vector<1x1x64xf32>
    %61 = vector.shape_cast %60 : vector<1x1x64xf32> to vector<64xf32>
    %62 = vector.shape_cast %61 : vector<64xf32> to vector<1x64xf32>
    %63 = vector.broadcast %62 : vector<1x64xf32> to vector<16x64xf32>
    %64 = arith.mulf %9, %63 : vector<16x64xf32>
    %65 = arith.addf %59, %64 : vector<16x64xf32>
    %c3_46 = arith.constant 3 : index
    %c1_47 = arith.constant 1 : index
    %c0_48 = arith.constant 0 : index
    %66 = vector.load %arg4[%c3_46, %c1_47, %c0_48] : memref<4x4x64xf32, #tpu.memory_space<vmem>>, vector<1x1x64xf32>
    %67 = vector.shape_cast %66 : vector<1x1x64xf32> to vector<64xf32>
    %68 = vector.shape_cast %67 : vector<64xf32> to vector<1x64xf32>
    %69 = vector.broadcast %68 : vector<1x64xf32> to vector<16x64xf32>
    %70 = arith.mulf %12, %69 : vector<16x64xf32>
    %71 = arith.addf %65, %70 : vector<16x64xf32>
    %c0_49 = arith.constant 0 : index
    %c1_50 = arith.constant 1 : index
    %c0_51 = arith.constant 0 : index
    %c0_52 = arith.constant 0 : index
    %72 = vector.load %arg6[%c0_49, %c1_50, %c0_51, %c0_52] : memref<1x4x16x64xf32, #tpu.memory_space<vmem>>, vector<1x1x16x64xf32>
    %73 = vector.shape_cast %72 : vector<1x1x16x64xf32> to vector<16x64xf32>
    %74 = vector.shape_cast %71 : vector<16x64xf32> to vector<1x1x16x64xf32>
    tpu.vector_store %arg6[%c0_49, %c1_50, %c0_51, %c0_52], %74 {strides = array<i32>} : memref<1x4x16x64xf32, #tpu.memory_space<vmem>>, vector<1x1x16x64xf32>,
    %c0_53 = arith.constant 0 : index
    %c2_54 = arith.constant 2 : index
    %c0_55 = arith.constant 0 : index
    %75 = vector.load %arg4[%c0_53, %c2_54, %c0_55] : memref<4x4x64xf32, #tpu.memory_space<vmem>>, vector<1x1x64xf32>
    %76 = vector.shape_cast %75 : vector<1x1x64xf32> to vector<64xf32>
    %77 = vector.shape_cast %76 : vector<64xf32> to vector<1x64xf32>
    %78 = vector.broadcast %77 : vector<1x64xf32> to vector<16x64xf32>
    %79 = arith.mulf %3, %78 : vector<16x64xf32>
    %c2_56 = arith.constant 2 : index
    %c0_57 = arith.constant 0 : index
    %80 = vector.load %arg5[%c2_56, %c0_57] : memref<4x64xf32, #tpu.memory_space<vmem>>, vector<1x64xf32>
    %81 = vector.shape_cast %80 : vector<1x64xf32> to vector<64xf32>
    %82 = vector.shape_cast %81 : vector<64xf32> to vector<1x64xf32>
    %83 = vector.broadcast %82 : vector<1x64xf32> to vector<16x64xf32>
    %84 = arith.addf %79, %83 : vector<16x64xf32>
    %c1_58 = arith.constant 1 : index
    %c2_59 = arith.constant 2 : index
    %c0_60 = arith.constant 0 : index
    %85 = vector.load %arg4[%c1_58, %c2_59, %c0_60] : memref<4x4x64xf32, #tpu.memory_space<vmem>>, vector<1x1x64xf32>
    %86 = vector.shape_cast %85 : vector<1x1x64xf32> to vector<64xf32>
    %87 = vector.shape_cast %86 : vector<64xf32> to vector<1x64xf32>
    %88 = vector.broadcast %87 : vector<1x64xf32> to vector<16x64xf32>
    %89 = arith.mulf %6, %88 : vector<16x64xf32>
    %90 = arith.addf %84, %89 : vector<16x64xf32>
    %c2_61 = arith.constant 2 : index
    %c2_62 = arith.constant 2 : index
    %c0_63 = arith.constant 0 : index
    %91 = vector.load %arg4[%c2_61, %c2_62, %c0_63] : memref<4x4x64xf32, #tpu.memory_space<vmem>>, vector<1x1x64xf32>
    %92 = vector.shape_cast %91 : vector<1x1x64xf32> to vector<64xf32>
    %93 = vector.shape_cast %92 : vector<64xf32> to vector<1x64xf32>
    %94 = vector.broadcast %93 : vector<1x64xf32> to vector<16x64xf32>
    %95 = arith.mulf %9, %94 : vector<16x64xf32>
    %96 = arith.addf %90, %95 : vector<16x64xf32>
    %c3_64 = arith.constant 3 : index
    %c2_65 = arith.constant 2 : index
    %c0_66 = arith.constant 0 : index
    %97 = vector.load %arg4[%c3_64, %c2_65, %c0_66] : memref<4x4x64xf32, #tpu.memory_space<vmem>>, vector<1x1x64xf32>
    %98 = vector.shape_cast %97 : vector<1x1x64xf32> to vector<64xf32>
    %99 = vector.shape_cast %98 : vector<64xf32> to vector<1x64xf32>
    %100 = vector.broadcast %99 : vector<1x64xf32> to vector<16x64xf32>
    %101 = arith.mulf %12, %100 : vector<16x64xf32>
    %102 = arith.addf %96, %101 : vector<16x64xf32>
    %c0_67 = arith.constant 0 : index
    %c2_68 = arith.constant 2 : index
    %c0_69 = arith.constant 0 : index
    %c0_70 = arith.constant 0 : index
    %103 = vector.load %arg6[%c0_67, %c2_68, %c0_69, %c0_70] : memref<1x4x16x64xf32, #tpu.memory_space<vmem>>, vector<1x1x16x64xf32>
    %104 = vector.shape_cast %103 : vector<1x1x16x64xf32> to vector<16x64xf32>
    %105 = vector.shape_cast %102 : vector<16x64xf32> to vector<1x1x16x64xf32>
    tpu.vector_store %arg6[%c0_67, %c2_68, %c0_69, %c0_70], %105 {strides = array<i32>} : memref<1x4x16x64xf32, #tpu.memory_space<vmem>>, vector<1x1x16x64xf32>,
    %c0_71 = arith.constant 0 : index
    %c3_72 = arith.constant 3 : index
    %c0_73 = arith.constant 0 : index
    %106 = vector.load %arg4[%c0_71, %c3_72, %c0_73] : memref<4x4x64xf32, #tpu.memory_space<vmem>>, vector<1x1x64xf32>
    %107 = vector.shape_cast %106 : vector<1x1x64xf32> to vector<64xf32>
    %108 = vector.shape_cast %107 : vector<64xf32> to vector<1x64xf32>
    %109 = vector.broadcast %108 : vector<1x64xf32> to vector<16x64xf32>
    %110 = arith.mulf %3, %109 : vector<16x64xf32>
    %c3_74 = arith.constant 3 : index
    %c0_75 = arith.constant 0 : index
    %111 = vector.load %arg5[%c3_74, %c0_75] : memref<4x64xf32, #tpu.memory_space<vmem>>, vector<1x64xf32>
    %112 = vector.shape_cast %111 : vector<1x64xf32> to vector<64xf32>
    %113 = vector.shape_cast %112 : vector<64xf32> to vector<1x64xf32>
    %114 = vector.broadcast %113 : vector<1x64xf32> to vector<16x64xf32>
    %115 = arith.addf %110, %114 : vector<16x64xf32>
    %c1_76 = arith.constant 1 : index
    %c3_77 = arith.constant 3 : index
    %c0_78 = arith.constant 0 : index
    %116 = vector.load %arg4[%c1_76, %c3_77, %c0_78] : memref<4x4x64xf32, #tpu.memory_space<vmem>>, vector<1x1x64xf32>
    %117 = vector.shape_cast %116 : vector<1x1x64xf32> to vector<64xf32>
    %118 = vector.shape_cast %117 : vector<64xf32> to vector<1x64xf32>
    %119 = vector.broadcast %118 : vector<1x64xf32> to vector<16x64xf32>
    %120 = arith.mulf %6, %119 : vector<16x64xf32>
    %121 = arith.addf %115, %120 : vector<16x64xf32>
    %c2_79 = arith.constant 2 : index
    %c3_80 = arith.constant 3 : index
    %c0_81 = arith.constant 0 : index
    %122 = vector.load %arg4[%c2_79, %c3_80, %c0_81] : memref<4x4x64xf32, #tpu.memory_space<vmem>>, vector<1x1x64xf32>
    %123 = vector.shape_cast %122 : vector<1x1x64xf32> to vector<64xf32>
    %124 = vector.shape_cast %123 : vector<64xf32> to vector<1x64xf32>
    %125 = vector.broadcast %124 : vector<1x64xf32> to vector<16x64xf32>
    %126 = arith.mulf %9, %125 : vector<16x64xf32>
    %127 = arith.addf %121, %126 : vector<16x64xf32>
    %c3_82 = arith.constant 3 : index
    %c3_83 = arith.constant 3 : index
    %c0_84 = arith.constant 0 : index
    %128 = vector.load %arg4[%c3_82, %c3_83, %c0_84] : memref<4x4x64xf32, #tpu.memory_space<vmem>>, vector<1x1x64xf32>
    %129 = vector.shape_cast %128 : vector<1x1x64xf32> to vector<64xf32>
    %130 = vector.shape_cast %129 : vector<64xf32> to vector<1x64xf32>
    %131 = vector.broadcast %130 : vector<1x64xf32> to vector<16x64xf32>
    %132 = arith.mulf %12, %131 : vector<16x64xf32>
    %133 = arith.addf %127, %132 : vector<16x64xf32>
    %c0_85 = arith.constant 0 : index
    %c3_86 = arith.constant 3 : index
    %c0_87 = arith.constant 0 : index
    %c0_88 = arith.constant 0 : index
    %134 = vector.load %arg6[%c0_85, %c3_86, %c0_87, %c0_88] : memref<1x4x16x64xf32, #tpu.memory_space<vmem>>, vector<1x1x16x64xf32>
    %135 = vector.shape_cast %134 : vector<1x1x16x64xf32> to vector<16x64xf32>
    %136 = vector.shape_cast %133 : vector<16x64xf32> to vector<1x1x16x64xf32>
    tpu.vector_store %arg6[%c0_85, %c3_86, %c0_87, %c0_88], %136 {strides = array<i32>} : memref<1x4x16x64xf32, #tpu.memory_space<vmem>>, vector<1x1x16x64xf32>,
    return
  }
  func.func @transform_0(%arg0: i32, %arg1: i32) -> (i32, i32, i32, i32) {
    %c0_i32 = arith.constant 0 : i32
    %c0_i32_0 = arith.constant 0 : i32
    %c0_i32_1 = arith.constant 0 : i32
    return %arg0, %c0_i32, %arg1, %c0_i32_0 : i32, i32, i32, i32
  }
  func.func @transform_1(%arg0: i32, %arg1: i32) -> (i32, i32) {
    %c0_i32 = arith.constant 0 : i32
    %c0_i32_0 = arith.constant 0 : i32
    %c0_i32_1 = arith.constant 0 : i32
    return %c0_i32, %c0_i32_0 : i32, i32
  }
  func.func @transform_2(%arg0: i32, %arg1: i32) -> (i32, i32, i32) {
    %c0_i32 = arith.constant 0 : i32
    %c0_i32_0 = arith.constant 0 : i32
    %c0_i32_1 = arith.constant 0 : i32
    %c0_i32_2 = arith.constant 0 : i32
    return %c0_i32, %c0_i32_0, %c0_i32_1 : i32, i32, i32
  }
  func.func @transform_3(%arg0: i32, %arg1: i32) -> (i32, i32) {
    %c0_i32 = arith.constant 0 : i32
    %c0_i32_0 = arith.constant 0 : i32
    %c0_i32_1 = arith.constant 0 : i32
    return %c0_i32, %c0_i32_0 : i32, i32
  }
  func.func @transform_4(%arg0: i32, %arg1: i32) -> (i32, i32, i32, i32) {
    %c0_i32 = arith.constant 0 : i32
    %c0_i32_0 = arith.constant 0 : i32
    %c0_i32_1 = arith.constant 0 : i32
    return %arg0, %c0_i32, %arg1, %c0_i32_0 : i32, i32, i32, i32
  }
}

</mosaic_0001>

<llo_original>
// kernel: upsample_forward.1
$region0: #{upsample_forward.1}
  #allocation0 [shape = 'u32[]', space=smem, size = 0x4, offset = 0x4, fixed_abs, tag = 'smem constant byte address 0x4 - core index']
  #allocation1 [shape = 'u32[72,128]{1,0:T(1,128)}', space=vmem, size = 0x9000, scoped, tag = 'internal scratch']
  %s0 = inlined_call_operand.vmem [shape: f32[2,4,16,16], index: 0, kind: input, shape index: {}]
  %s1 = inlined_call_operand.vmem [shape: f32[16,64], index: 1, kind: input, shape index: {}]
  %s2 = inlined_call_operand.vmem [shape: f32[4,4,64], index: 2, kind: input, shape index: {}]
  %s3 = inlined_call_operand.vmem [shape: f32[4,64], index: 3, kind: input, shape index: {}]
  %s4 = inlined_call_operand.vmem [shape: f32[2,4,16,64], index: 4, kind: output, shape index: {}]
  %s5 = sld [smem:[#allocation0]]
  $region49: #{upsample_forward.1} parent=0
    _
  %s7 = ssub.s32 1, %s5
  %s8 = scalar_select 0, %s7, %s5
  loop: start=0, step=1, limit=4
  $region2: #{upsample_forward.1} parent=0 // loop_pre_header
    _
  $region3: #{upsample_forward.1} parent=0 // loop_header
    %s10 = sphi 0, %s14
    %p11 = scmp.ge.s32.totalorder %s10, 4
    %s17 = sphi 0, %s29
    %s18 = sphi 0, %s25
    %s19 = sphi 0, %s17
    %s20 = sphi 0, %s18
    %s21 = sphi 0, %s19
    %s22 = sphi 0, %s20
    %s34 = sphi 0, %s36
    %s37 = sphi 0, %s34
    %s38 = sphi 0, %s37
    %s54 = sphi 0, %s38
    %s58 = sphi 0, %s58
    %s60 = sphi 0, %s58
    %s61 = sphi 0, %s60
    %s75 = sphi 0, %s61
    %s79 = sphi 0, %s79
    %s81 = sphi 0, %s79
    %s82 = sphi 0, %s81
    %s96 = sphi 0, %s82
    %s100 = sphi 0, %s100
    %s102 = sphi 0, %s100
    %s103 = sphi 0, %s102
    %s117 = sphi 0, %s103
    %s125 = sphi 0, %s127
    %s128 = sphi 0, %s125
    %s129 = sphi 0, %s128
    %s145 = sphi 0, %s129
  $region4: #{upsample_forward.1} parent=0 // loop_header_branch
    %13 = sbr.rel (%p11) target = $region8
  $region5: #{upsample_forward.1} parent=0 // loop_body
    %s15 = ssub.s32 %s10, 1
    %s16 = ssub.s32 %s10, 2
    %s23 = sadd.s32 1, %s18
    %p24 = scmp.ge.s32.totalorder %s23, 1
    %s25 = scalar_select %p24, 0, %s23
    %s26 = sadd.s32 1, %s17
    %s27 = scalar_select %p24, %s26, %s17
    %p28 = scmp.ge.s32.totalorder %s27, 2
    %s29 = scalar_select %p28, 0, %s27
    %s30 = ssub.s32 %s17, %s29
    %s31 = ssub.s32 %s18, %s25
    %s32 = sor.u32 %s30, %s31
    %p33 = scmp.eq.s32.totalorder %s32, 0
    %s35 = sadd.s32 %s34, 1
    %s36 = scalar_select %p33, %s34, %s35
    %p39 = pneg %p33
    %p40 = scmp.eq.s32.totalorder %s10, 1
    %p41 = por %p39, %p40
    %p42 = scmp.ne.s32.totalorder %s34, %s37
    %p43 = scmp.eq.s32.totalorder %s10, 0
    %p44 = por %p42, %p43
    %p45 = scmp.ne.s32.totalorder %s34, %s37
    %p46 = scmp.eq.s32.totalorder %s15, 1
    %p47 = por %p45, %p46
    %p48 = scmp.ne.s32.totalorder %s37, %s38
    %p49 = scmp.eq.s32.totalorder %s15, 0
    %p50 = por %p48, %p49
    %p51 = scmp.ne.s32.totalorder %s37, %s38
    %p52 = scmp.eq.s32.totalorder %s16, 1
    %p53 = por %p51, %p52
    %p55 = scmp.ne.s32.totalorder %s38, %s54
    %p56 = scmp.eq.s32.totalorder %s16, 0
    %p57 = por %p55, %p56
    %s59 = sadd.s32 %s58, 1
    %p62 = scmp.eq.s32.totalorder %s10, 1
    %p63 = scmp.ne.s32.totalorder %s58, %s60
    %p64 = scmp.eq.s32.totalorder %s10, 0
    %p65 = por %p63, %p64
    %p66 = scmp.ne.s32.totalorder %s58, %s60
    %p67 = scmp.eq.s32.totalorder %s15, 1
    %p68 = por %p66, %p67
    %p69 = scmp.ne.s32.totalorder %s60, %s61
    %p70 = scmp.eq.s32.totalorder %s15, 0
    %p71 = por %p69, %p70
    %p72 = scmp.ne.s32.totalorder %s60, %s61
    %p73 = scmp.eq.s32.totalorder %s16, 1
    %p74 = por %p72, %p73
    %p76 = scmp.ne.s32.totalorder %s61, %s75
    %p77 = scmp.eq.s32.totalorder %s16, 0
    %p78 = por %p76, %p77
    %s80 = sadd.s32 %s79, 1
    %p83 = scmp.eq.s32.totalorder %s10, 1
    %p84 = scmp.ne.s32.totalorder %s79, %s81
    %p85 = scmp.eq.s32.totalorder %s10, 0
    %p86 = por %p84, %p85
    %p87 = scmp.ne.s32.totalorder %s79, %s81
    %p88 = scmp.eq.s32.totalorder %s15, 1
    %p89 = por %p87, %p88
    %p90 = scmp.ne.s32.totalorder %s81, %s82
    %p91 = scmp.eq.s32.totalorder %s15, 0
    %p92 = por %p90, %p91
    %p93 = scmp.ne.s32.totalorder %s81, %s82
    %p94 = scmp.eq.s32.totalorder %s16, 1
    %p95 = por %p93, %p94
    %p97 = scmp.ne.s32.totalorder %s82, %s96
    %p98 = scmp.eq.s32.totalorder %s16, 0
    %p99 = por %p97, %p98
    %s101 = sadd.s32 %s100, 1
    %p104 = scmp.eq.s32.totalorder %s10, 1
    %p105 = scmp.ne.s32.totalorder %s100, %s102
    %p106 = scmp.eq.s32.totalorder %s10, 0
    %p107 = por %p105, %p106
    %p108 = scmp.ne.s32.totalorder %s100, %s102
    %p109 = scmp.eq.s32.totalorder %s15, 1
    %p110 = por %p108, %p109
    %p111 = scmp.ne.s32.totalorder %s102, %s103
    %p112 = scmp.eq.s32.totalorder %s15, 0
    %p113 = por %p111, %p112
    %p114 = scmp.ne.s32.totalorder %s102, %s103
    %p115 = scmp.eq.s32.totalorder %s16, 1
    %p116 = por %p114, %p115
    %p118 = scmp.ne.s32.totalorder %s103, %s117
    %p119 = scmp.eq.s32.totalorder %s16, 0
    %p120 = por %p118, %p119
    %s121 = ssub.s32 %s17, %s29
    %s122 = ssub.s32 %s18, %s25
    %s123 = sor.u32 %s121, %s122
    %p124 = scmp.eq.s32.totalorder %s123, 0
    %s126 = sadd.s32 %s125, 1
    %s127 = scalar_select %p124, %s125, %s126
    %p130 = pneg %p124
    %p131 = scmp.eq.s32.totalorder %s10, 1
    %p132 = por %p130, %p131
    %p133 = scmp.ne.s32.totalorder %s125, %s128
    %p134 = scmp.eq.s32.totalorder %s10, 0
    %p135 = por %p133, %p134
    %p136 = scmp.ne.s32.totalorder %s125, %s128
    %p137 = scmp.eq.s32.totalorder %s15, 1
    %p138 = por %p136, %p137
    %p139 = scmp.ne.s32.totalorder %s128, %s129
    %p140 = scmp.eq.s32.totalorder %s15, 0
    %p141 = por %p139, %p140
    %p142 = scmp.ne.s32.totalorder %s128, %s129
    %p143 = scmp.eq.s32.totalorder %s16, 1
    %p144 = por %p142, %p143
    %p146 = scmp.ne.s32.totalorder %s129, %s145
    %p147 = scmp.eq.s32.totalorder %s16, 0
    %p148 = por %p146, %p147
    %p149 = scmp.le.s32.totalorder 1, %s10
    %p150 = scmp.lt.s32.totalorder %s10, 3
    %p151 = pnand %p149, %p150
    %p152 = pneg %p151
    // Predicated region
    $region9: #{upsample_forward.1} parent=5 // pred_check
      _
    $region10: #{upsample_forward.1} parent=5 // pred_check_branch
      %154 = sbr.rel (%p151) target = $region12
    $region11: #{upsample_forward.1} parent=5 // pred_region
      %s155 = ssub.s32 %s10, 1
      // Predicated region
      $region13: #{upsample_forward.1} parent=11 // pred_check
        %p156 = pneg %p71
      $region14: #{upsample_forward.1} parent=11 // pred_check_branch
        %158 = sbr.rel (%p156) target = $region16
      $region15: #{upsample_forward.1} parent=11 // pred_region
        _
      $region16: #{upsample_forward.1} parent=11 // pred_fallthru
        _
      // Predicated region
      $region17: #{upsample_forward.1} parent=11 // pred_check
        %p159 = pneg %p92
      $region18: #{upsample_forward.1} parent=11 // pred_check_branch
        %161 = sbr.rel (%p159) target = $region20
      $region19: #{upsample_forward.1} parent=11 // pred_region
        _
      $region20: #{upsample_forward.1} parent=11 // pred_fallthru
        _
      // Predicated region
      $region21: #{upsample_forward.1} parent=11 // pred_check
        %p162 = pneg %p113
      $region22: #{upsample_forward.1} parent=11 // pred_check_branch
        %164 = sbr.rel (%p162) target = $region24
      $region23: #{upsample_forward.1} parent=11 // pred_region
        _
      $region24: #{upsample_forward.1} parent=11 // pred_fallthru
        _
    $region12: #{upsample_forward.1} parent=5 // pred_fallthru
      _
    %p165 = scmp.lt.s32.totalorder %s10, 2
    // Predicated region
    $region25: #{upsample_forward.1} parent=5 // pred_check
      %p166 = pneg %p165
    $region26: #{upsample_forward.1} parent=5 // pred_check_branch
      %168 = sbr.rel (%p166) target = $region28
    $region27: #{upsample_forward.1} parent=5 // pred_region
      // Predicated region
      $region29: #{upsample_forward.1} parent=27 // pred_check
        %p169 = pneg %p44
      $region30: #{upsample_forward.1} parent=27 // pred_check_branch
        %171 = sbr.rel (%p169) target = $region32
      $region31: #{upsample_forward.1} parent=27 // pred_region
        %s172 = smul.u32 2, %s18
        %p173 = scmp.lt.s32.totalorder %s17, 1
        %s174 = scalar_select %p173, %s17, 1
        %p175 = scmp.lt.s32.totalorder %s172, 1
        %s176 = scalar_select %p175, %s172, 1
        %s177 = smul.addr %s174, 8
        %s178 = sadd.s32 %s176, %s177
        %s179 = smul.addr %s178, 8
        %s180 = scalar_lea.vmem %s0, %s179
        %s181 = smul.u32 2, %s18
      $region32: #{upsample_forward.1} parent=27 // pred_fallthru
        _
    $region28: #{upsample_forward.1} parent=5 // pred_fallthru
      _
    %p182 = scmp.le.s32.totalorder 1, %s10
    %p183 = scmp.lt.s32.totalorder %s10, 3
    %p184 = pnand %p182, %p183
    %p185 = pneg %p184
    // Predicated region
    $region33: #{upsample_forward.1} parent=5 // pred_check
      _
    $region34: #{upsample_forward.1} parent=5 // pred_check_branch
      %187 = sbr.rel (%p184) target = $region36
    $region35: #{upsample_forward.1} parent=5 // pred_region
      %s188 = ssub.s32 %s10, 1
      %s189 = smul.u32 2, %s20
      %p190 = scmp.lt.s32.totalorder %s19, 1
      %s191 = scalar_select %p190, %s19, 1
      %p192 = scmp.lt.s32.totalorder %s189, 1
      %s193 = scalar_select %p192, %s189, 1
      %s194 = smul.addr %s191, 8
      %s195 = sadd.s32 %s193, %s194
      %s196 = smul.addr %s195, 8
      %s197 = scalar_lea.vmem %s0, %s196
      %p198 = pneg %p50
      %p199 = pneg %p47
      %p200 = pneg %p71
      %p201 = pneg %p68
      %p202 = pneg %p92
      %p203 = pneg %p89
      %p204 = pneg %p113
      %p205 = pneg %p110
      %p206 = pneg %p141
      %p207 = pneg %p138
      %s208 = smul.u32 2, %s20
      %p209 = scmp.lt.s32.totalorder %s19, 1
      %s210 = scalar_select %p209, %s19, 1
      %p211 = scmp.lt.s32.totalorder %s208, 1
      %s212 = scalar_select %p211, %s208, 1
      %s213 = smul.addr %s210, 8
      %s214 = sadd.s32 %s212, %s213
      %s215 = smul.addr %s214, 8
      %s216 = scalar_lea.vmem %s4, %s215
      %s217 = smul.u32 2, %s20
      %p218 = scmp.lt.s32.totalorder %s19, 1
      %s219 = scalar_select %p218, %s19, 1
      %p220 = scmp.lt.s32.totalorder %s217, 1
      %s221 = scalar_select %p220, %s217, 1
      %s222 = smul.addr %s219, 8
      %s223 = sadd.s32 %s221, %s222
      %s224 = smul.addr %s223, 8
      %s225 = scalar_lea.vmem %s0, %s224
      %s226 = smul.u32 2, %s20
      %s227 = smul.u32 2, %s20
      %p228 = scmp.lt.s32.totalorder %s19, 1
      %s229 = scalar_select %p228, %s19, 1
      %p230 = scmp.lt.s32.totalorder %s227, 1
      %s231 = scalar_select %p230, %s227, 1
      %s232 = smul.addr %s229, 8
      %s233 = sadd.s32 %s231, %s232
      %s234 = smul.addr %s233, 8
      %s235 = scalar_lea.vmem %s4, %s234
      %s236 = smul.u32 2, %s20
      %v237 = vld [vmem:[%s1] sm:$0xff]
      %v238 = vld [vmem:[%s1 + $0x8] sm:$0xff]
      %v239 = vld [vmem:[%s225] sm:$0xff]
      %v240 = vld [vmem:[%s225 + $0x8] sm:$0xff]
      %vm241 = vcmask 130048
      %v243 = vsel %vm241, %v239, 0
      %v246 = vsel %vm241, %v240, 0
      %248 = vmatpush.msra.mxu0 0.0
      %249 = vmatpush.msra.mxu0 0.0
      %250 = vmatpush.msra.mxu0 0.0
      %251 = vmatpush.msra.mxu0 0.0
      %252 = vmatpush.msra.mxu0 0.0
      %253 = vmatpush.msra.mxu0 0.0
      %254 = vmatpush.msra.mxu0 0.0
      %255 = vmatpush.msra.mxu0 0.0
      %256 = vmatpush.msra.mxu0 0.0
      %257 = vmatpush.msra.mxu0 0.0
      %258 = vmatpush.msra.mxu0 0.0
      %259 = vmatpush.msra.mxu0 0.0
      %260 = vmatpush.msra.mxu0 0.0
      %261 = vmatpush.msra.mxu0 0.0
      %262 = vmatpush.msra.mxu0 %v238
      %263 = vmatpush.msra.mxu0 %v237
      %264 = vmatmul.f32.gmra.mxu0 %v243
      %v265 = vpop.f32.mrf.mxu0
      %v266 = vadd.f32 0.0, %v265
      %267 = vmatmul.f32.gmra.mxu0 %v246
      %v268 = vpop.f32.mrf.mxu0
      %v269 = vadd.f32 0.0, %v268
      %270 = vdwg.mxu0
      %s271 = scalar_lea.vmem %s225, 16
      %v272 = vld [vmem:[%s271] sm:$0xff]
      %v273 = vld [vmem:[%s271 + $0x8] sm:$0xff]
      %v275 = vsel %vm241, %v272, 0
      %v278 = vsel %vm241, %v273, 0
      %280 = vmatpush.msra.mxu0 0.0
      %281 = vmatpush.msra.mxu0 0.0
      %282 = vmatpush.msra.mxu0 0.0
      %283 = vmatpush.msra.mxu0 0.0
      %284 = vmatpush.msra.mxu0 0.0
      %285 = vmatpush.msra.mxu0 0.0
      %286 = vmatpush.msra.mxu0 0.0
      %287 = vmatpush.msra.mxu0 0.0
      %288 = vmatpush.msra.mxu0 0.0
      %289 = vmatpush.msra.mxu0 0.0
      %290 = vmatpush.msra.mxu0 0.0
      %291 = vmatpush.msra.mxu0 0.0
      %292 = vmatpush.msra.mxu0 0.0
      %293 = vmatpush.msra.mxu0 0.0
      %294 = vmatpush.msra.mxu0 %v238
      %295 = vmatpush.msra.mxu0 %v237
      %296 = vmatmul.f32.gmra.mxu0 %v275
      %v297 = vpop.f32.mrf.mxu0
      %v298 = vadd.f32 0.0, %v297
      %299 = vmatmul.f32.gmra.mxu0 %v278
      %v300 = vpop.f32.mrf.mxu0
      %v301 = vadd.f32 0.0, %v300
      %302 = vdwg.mxu0
      %s303 = scalar_lea.vmem %s225, 32
      %v304 = vld [vmem:[%s303] sm:$0xff]
      %v305 = vld [vmem:[%s303 + $0x8] sm:$0xff]
      %v307 = vsel %vm241, %v304, 0
      %v310 = vsel %vm241, %v305, 0
      %312 = vmatpush.msra.mxu0 0.0
      %313 = vmatpush.msra.mxu0 0.0
      %314 = vmatpush.msra.mxu0 0.0
      %315 = vmatpush.msra.mxu0 0.0
      %316 = vmatpush.msra.mxu0 0.0
      %317 = vmatpush.msra.mxu0 0.0
      %318 = vmatpush.msra.mxu0 0.0
      %319 = vmatpush.msra.mxu0 0.0
      %320 = vmatpush.msra.mxu0 0.0
      %321 = vmatpush.msra.mxu0 0.0
      %322 = vmatpush.msra.mxu0 0.0
      %323 = vmatpush.msra.mxu0 0.0
      %324 = vmatpush.msra.mxu0 0.0
      %325 = vmatpush.msra.mxu0 0.0
      %326 = vmatpush.msra.mxu0 %v238
      %327 = vmatpush.msra.mxu0 %v237
      %328 = vmatmul.f32.gmra.mxu0 %v307
      %v329 = vpop.f32.mrf.mxu0
      %v330 = vadd.f32 0.0, %v329
      %331 = vmatmul.f32.gmra.mxu0 %v310
      %v332 = vpop.f32.mrf.mxu0
      %v333 = vadd.f32 0.0, %v332
      %334 = vdwg.mxu0
      %s335 = scalar_lea.vmem %s225, 48
      %v336 = vld [vmem:[%s335] sm:$0xff]
      %v337 = vld [vmem:[%s335 + $0x8] sm:$0xff]
      %v339 = vsel %vm241, %v336, 0
      %v342 = vsel %vm241, %v337, 0
      %344 = vmatpush.msra.mxu0 0.0
      %345 = vmatpush.msra.mxu0 0.0
      %346 = vmatpush.msra.mxu0 0.0
      %347 = vmatpush.msra.mxu0 0.0
      %348 = vmatpush.msra.mxu0 0.0
      %349 = vmatpush.msra.mxu0 0.0
      %350 = vmatpush.msra.mxu0 0.0
      %351 = vmatpush.msra.mxu0 0.0
      %352 = vmatpush.msra.mxu0 0.0
      %353 = vmatpush.msra.mxu0 0.0
      %354 = vmatpush.msra.mxu0 0.0
      %355 = vmatpush.msra.mxu0 0.0
      %356 = vmatpush.msra.mxu0 0.0
      %357 = vmatpush.msra.mxu0 0.0
      %358 = vmatpush.msra.mxu0 %v238
      %359 = vmatpush.msra.mxu0 %v237
      %360 = vmatmul.f32.gmra.mxu0 %v339
      %v361 = vpop.f32.mrf.mxu0
      %v362 = vadd.f32 0.0, %v361
      %363 = vmatmul.f32.gmra.mxu0 %v342
      %v364 = vpop.f32.mrf.mxu0
      %v365 = vadd.f32 0.0, %v364
      %366 = vdwg.mxu0
      %v367 = vld [vmem:[%s2] sm:$0x1]
      %v368 = vperm.slane %v367, 0
      %v369 = vmul.f32 %v266, %v368
      %v370 = vmul.f32 %v269, %v368
      %v371 = vld [vmem:[%s3] sm:$0x1]
      %v372 = vperm.slane %v371, 0
      %v373 = vadd.f32 %v369, %v372
      %v374 = vadd.f32 %v370, %v372
      %s375 = scalar_lea.vmem %s2, 4
      %v376 = vld [vmem:[%s375] sm:$0x1]
      %v377 = vperm.slane %v376, 0
      %v378 = vmul.f32 %v298, %v377
      %v379 = vmul.f32 %v301, %v377
      %v380 = vadd.f32 %v373, %v378
      %v381 = vadd.f32 %v374, %v379
      %s382 = scalar_lea.vmem %s2, 8
      %v383 = vld [vmem:[%s382] sm:$0x1]
      %v384 = vperm.slane %v383, 0
      %v385 = vmul.f32 %v330, %v384
      %v386 = vmul.f32 %v333, %v384
      %v387 = vadd.f32 %v380, %v385
      %v388 = vadd.f32 %v381, %v386
      %s389 = scalar_lea.vmem %s2, 12
      %v390 = vld [vmem:[%s389] sm:$0x1]
      %v391 = vperm.slane %v390, 0
      %v392 = vmul.f32 %v362, %v391
      %v393 = vmul.f32 %v365, %v391
      %v394 = vadd.f32 %v387, %v392
      %v395 = vadd.f32 %v388, %v393
      %vm396 = vcmask 523264
      %397 = vst.msk [vmem:[%s235] sm:$0xff] %vm396, %v394
      %398 = vst.msk [vmem:[%s235 + $0x8] sm:$0xff] %vm396, %v395
      %v399 = vld [vmem:[%s2 + $0x1] sm:$0x1]
      %v400 = vperm.slane %v399, 0
      %v401 = vmul.f32 %v266, %v400
      %v402 = vmul.f32 %v269, %v400
      %v403 = vld [vmem:[%s3 + $0x1] sm:$0x1]
      %v404 = vperm.slane %v403, 0
      %v405 = vadd.f32 %v401, %v404
      %v406 = vadd.f32 %v402, %v404
      %v407 = vld [vmem:[%s375 + $0x1] sm:$0x1]
      %v408 = vperm.slane %v407, 0
      %v409 = vmul.f32 %v298, %v408
      %v410 = vmul.f32 %v301, %v408
      %v411 = vadd.f32 %v405, %v409
      %v412 = vadd.f32 %v406, %v410
      %v413 = vld [vmem:[%s382 + $0x1] sm:$0x1]
      %v414 = vperm.slane %v413, 0
      %v415 = vmul.f32 %v330, %v414
      %v416 = vmul.f32 %v333, %v414
      %v417 = vadd.f32 %v411, %v415
      %v418 = vadd.f32 %v412, %v416
      %v419 = vld [vmem:[%s389 + $0x1] sm:$0x1]
      %v420 = vperm.slane %v419, 0
      %v421 = vmul.f32 %v362, %v420
      %v422 = vmul.f32 %v365, %v420
      %v423 = vadd.f32 %v417, %v421
      %v424 = vadd.f32 %v418, %v422
      %s425 = scalar_lea.vmem %s235, 16
      %426 = vst.msk [vmem:[%s425] sm:$0xff] %vm396, %v423
      %427 = vst.msk [vmem:[%s425 + $0x8] sm:$0xff] %vm396, %v424
      %v428 = vld [vmem:[%s2 + $0x2] sm:$0x1]
      %v429 = vperm.slane %v428, 0
      %v430 = vmul.f32 %v266, %v429
      %v431 = vmul.f32 %v269, %v429
      %v432 = vld [vmem:[%s3 + $0x2] sm:$0x1]
      %v433 = vperm.slane %v432, 0
      %v434 = vadd.f32 %v430, %v433
      %v435 = vadd.f32 %v431, %v433
      %v436 = vld [vmem:[%s375 + $0x2] sm:$0x1]
      %v437 = vperm.slane %v436, 0
      %v438 = vmul.f32 %v298, %v437
      %v439 = vmul.f32 %v301, %v437
      %v440 = vadd.f32 %v434, %v438
      %v441 = vadd.f32 %v435, %v439
      %v442 = vld [vmem:[%s382 + $0x2] sm:$0x1]
      %v443 = vperm.slane %v442, 0
      %v444 = vmul.f32 %v330, %v443
      %v445 = vmul.f32 %v333, %v443
      %v446 = vadd.f32 %v440, %v444
      %v447 = vadd.f32 %v441, %v445
      %v448 = vld [vmem:[%s389 + $0x2] sm:$0x1]
      %v449 = vperm.slane %v448, 0
      %v450 = vmul.f32 %v362, %v449
      %v451 = vmul.f32 %v365, %v449
      %v452 = vadd.f32 %v446, %v450
      %v453 = vadd.f32 %v447, %v451
      %s454 = scalar_lea.vmem %s235, 32
      %455 = vst.msk [vmem:[%s454] sm:$0xff] %vm396, %v452
      %456 = vst.msk [vmem:[%s454 + $0x8] sm:$0xff] %vm396, %v453
      %v457 = vld [vmem:[%s2 + $0x3] sm:$0x1]
      %v458 = vperm.slane %v457, 0
      %v459 = vmul.f32 %v266, %v458
      %v460 = vmul.f32 %v269, %v458
      %v461 = vld [vmem:[%s3 + $0x3] sm:$0x1]
      %v462 = vperm.slane %v461, 0
      %v463 = vadd.f32 %v459, %v462
      %v464 = vadd.f32 %v460, %v462
      %v465 = vld [vmem:[%s375 + $0x3] sm:$0x1]
      %v466 = vperm.slane %v465, 0
      %v467 = vmul.f32 %v298, %v466
      %v468 = vmul.f32 %v301, %v466
      %v469 = vadd.f32 %v463, %v467
      %v470 = vadd.f32 %v464, %v468
      %v471 = vld [vmem:[%s382 + $0x3] sm:$0x1]
      %v472 = vperm.slane %v471, 0
      %v473 = vmul.f32 %v330, %v472
      %v474 = vmul.f32 %v333, %v472
      %v475 = vadd.f32 %v469, %v473
      %v476 = vadd.f32 %v470, %v474
      %v477 = vld [vmem:[%s389 + $0x3] sm:$0x1]
      %v478 = vperm.slane %v477, 0
      %v479 = vmul.f32 %v362, %v478
      %v480 = vmul.f32 %v365, %v478
      %v481 = vadd.f32 %v475, %v479
      %v482 = vadd.f32 %v476, %v480
      %s483 = scalar_lea.vmem %s235, 48
      %484 = vst.msk [vmem:[%s483] sm:$0xff] %vm396, %v481
      %485 = vst.msk [vmem:[%s483 + $0x8] sm:$0xff] %vm396, %v482
      %s486 = smul.u32 2, %s20
      %p487 = scmp.lt.s32.totalorder %s19, 1
      %s488 = scalar_select %p487, %s19, 1
      %p489 = scmp.lt.s32.totalorder %s486, 1
      %s490 = scalar_select %p489, %s486, 1
      %s491 = smul.addr %s488, 8
      %s492 = sadd.s32 %s490, %s491
      %s493 = smul.addr %s492, 8
      %s494 = scalar_lea.vmem %s4, %s493
      // Predicated region
      $region37: #{upsample_forward.1} parent=35 // pred_check
        %p495 = pneg %p138
      $region38: #{upsample_forward.1} parent=35 // pred_check_branch
        %497 = sbr.rel (%p495) target = $region40
      $region39: #{upsample_forward.1} parent=35 // pred_region
        %s498 = smul.u32 2, %s20
      $region40: #{upsample_forward.1} parent=35 // pred_fallthru
        _
    $region36: #{upsample_forward.1} parent=5 // pred_fallthru
      _
    %p499 = scmp.le.s32.totalorder 2, %s10
    // Predicated region
    $region41: #{upsample_forward.1} parent=5 // pred_check
      %p500 = pneg %p499
    $region42: #{upsample_forward.1} parent=5 // pred_check_branch
      %502 = sbr.rel (%p500) target = $region44
    $region43: #{upsample_forward.1} parent=5 // pred_region
      %s503 = ssub.s32 %s10, 2
      // Predicated region
      $region45: #{upsample_forward.1} parent=43 // pred_check
        %p504 = pneg %p144
      $region46: #{upsample_forward.1} parent=43 // pred_check_branch
        %506 = sbr.rel (%p504) target = $region48
      $region47: #{upsample_forward.1} parent=43 // pred_region
        %s507 = smul.u32 2, %s22
        %p508 = scmp.lt.s32.totalorder %s21, 1
        %s509 = scalar_select %p508, %s21, 1
        %p510 = scmp.lt.s32.totalorder %s507, 1
        %s511 = scalar_select %p510, %s507, 1
        %s512 = smul.addr %s509, 8
        %s513 = sadd.s32 %s511, %s512
        %s514 = smul.addr %s513, 8
        %s515 = scalar_lea.vmem %s4, %s514
      $region48: #{upsample_forward.1} parent=43 // pred_fallthru
        _
    $region44: #{upsample_forward.1} parent=5 // pred_fallthru
      _
  $region6: #{upsample_forward.1} parent=0 // loop_footer
    %s14 = sadd.s32 1, %s10
  $region7: #{upsample_forward.1} parent=0 // loop_footer_branch
    %9 = sbr.rel target = $region3
  $region8: #{upsample_forward.1} parent=0 // loop_exit
    _

</llo_original>
